<compile_context>
chip_gen: v5e
topology: v5e:2x2
jax: 0.10.0
libtpu: 0.0.40
codegen_flags: <defaults>
</compile_context>

<pallas_src>
import jax
import jax.numpy as jnp
from jax.experimental import pallas as pl
from jax.experimental.pallas import tpu as pltpu


def _round_down_mult(x, m):
    return (x // m) * m


def dnn_kernel(x_ref, w_ref, b_ref, o_ref):
    # x_ref: (TILE_R, PD) VMEM, streamed in the input dtype (upcast here).
    # w_ref: (PD, P)      VMEM, block-diagonal packed weight (resident).
    # b_ref: (1,)         SMEM scalar bias.
    # o_ref: (TILE_R, P)  VMEM output block.
    x = x_ref[...].astype(jnp.float32)
    w = w_ref[...]
    # MXU contraction; with the packed layout this is (TILE_R, 128) @ (128, P).
    logits = jnp.dot(x, w, preferred_element_type=jnp.float32) + b_ref[0]
    # Exact sigmoid: exp on the EUP, exact divide (approx vrcp failed the
    # 1e-3 tolerance previously).
    sig = 1.0 / (1.0 + jnp.exp(-logits))
    o_ref[...] = sig.astype(o_ref.dtype)


def dnn_net_forward(x, weight, bias, *, tile_bytes=4 << 20,
                    vmem_limit_bytes=48 << 20):
    """sigmoid(x @ weight.T + bias)  ==  nn.Linear(D, 1) + sigmoid.

    x: (B, D), weight: (1, D) (PyTorch nn.Linear layout), bias: (1,).
    Returns (B, 1) float32.
    """
    B, D = x.shape
    w_col = weight.reshape(D, 1).astype(jnp.float32)
    b_vec = bias.reshape(1).astype(jnp.float32)

    # Lane packing: view (B, D) as (B//P, P*D) — a zero-copy row-major reshape —
    # so the streamed tile is lane-dense (P*D == 128 when D divides 128).
    if D < 128 and 128 % D == 0 and B % (128 // D) == 0:
        pack = 128 // D
    else:
        pack = 1                      # fall back to the unpacked (B, D) layout
    rows = B // pack
    pd = pack * D
    x_packed = x.reshape(rows, pd)    # keep input dtype; no wrapper cast of X
    # Block-diagonal packed weight: w_blk[g*D:(g+1)*D, g] = weight.
    w_blk = jnp.kron(jnp.eye(pack, dtype=jnp.float32), w_col)      # (pd, pack)

    # Multi-MiB batch tiles for this HBM-streaming op; tile rows are a multiple
    # of 8 (sublane rule) or the full row extent when everything fits one tile.
    row_bytes = pd * x.dtype.itemsize
    max_tile_rows = max(8, _round_down_mult(max(1, tile_bytes // row_bytes), 8))
    tile_rows = rows if rows <= max_tile_rows else max_tile_rows
    grid = pl.cdiv(rows, tile_rows)   # ragged tail tile handled by block masking

    cost = pl.CostEstimate(
        flops=2 * B * D,
        transcendentals=B,
        bytes_accessed=B * D * x.dtype.itemsize + B * 4 + pd * pack * 4 + 4,
    )

    out_packed = pl.pallas_call(
        dnn_kernel,
        out_shape=jax.ShapeDtypeStruct((rows, pack), jnp.float32),
        grid_spec=pltpu.PrefetchScalarGridSpec(
            num_scalar_prefetch=0,
            grid=(grid,),
            in_specs=[
                # X stream: double-buffered multi-MiB tiles, original dtype.
                pl.BlockSpec((tile_rows, pd), lambda i: (i, 0)),
                # Packed weight: constant index_map -> stays VMEM-resident.
                pl.BlockSpec((pd, pack), lambda i: (0, 0)),
                # Bias: scalar in SMEM.
                pl.BlockSpec(memory_space=pltpu.MemorySpace.SMEM),
            ],
            out_specs=pl.BlockSpec((tile_rows, pack), lambda i: (i, 0)),
        ),
        compiler_params=pltpu.CompilerParams(
            dimension_semantics=("parallel",),
            vmem_limit_bytes=vmem_limit_bytes),
        cost_estimate=cost,
    )(x_packed, w_blk, b_vec)

    # rows * pack == B exactly (packing requires divisibility), so this reshape
    # restores the original batch order.
    return out_packed.reshape(B, 1)


if __name__ == "__main__":
    key = jax.random.PRNGKey(0)
    kx, kw, kb, kx2, kx3 = jax.random.split(key, 5)

    # "deepdata" has D features; small demo batch.
    B, D = 8, 32
    x = jax.random.normal(kx, (B, D), dtype=jnp.float32)

    # nn.Linear-style init: U(-1/sqrt(D), 1/sqrt(D)); weight (1, D), bias (1,)
    bound = 1.0 / jnp.sqrt(jnp.float32(D))
    w = jax.random.uniform(kw, (1, D), dtype=jnp.float32,
                           minval=-bound, maxval=bound)
    b = jax.random.uniform(kb, (1,), dtype=jnp.float32,
                           minval=-bound, maxval=bound)

    out = jax.block_until_ready(dnn_net_forward(x, w, b))
    ref = jax.nn.sigmoid(x @ w.T + b)
    assert out.shape == (B, 1)
    assert jnp.allclose(out, ref, atol=1e-4, rtol=1e-4), \
        float(jnp.max(jnp.abs(out - ref)))

    # Multi-tile grid + ragged tail tile (250 packed rows, 16-row tiles).
    B2 = 1000
    x2 = jax.random.normal(kx2, (B2, D), dtype=jnp.float32)
    out2 = jax.block_until_ready(dnn_net_forward(x2, w, b, tile_bytes=8192))
    ref2 = jax.nn.sigmoid(x2 @ w.T + b)
    assert out2.shape == (B2, 1)
    assert jnp.allclose(out2, ref2, atol=1e-4, rtol=1e-4), \
        float(jnp.max(jnp.abs(out2 - ref2)))

    # Unpacked fallback path (B not divisible by the lane-pack factor) with a
    # ragged tail tile.
    B3 = 10
    x3 = jax.random.normal(kx3, (B3, D), dtype=jnp.float32)
    out3 = jax.block_until_ready(dnn_net_forward(x3, w, b, tile_bytes=1024))
    ref3 = jax.nn.sigmoid(x3 @ w.T + b)
    assert out3.shape == (B3, 1)
    assert jnp.allclose(out3, ref3, atol=1e-4, rtol=1e-4), \
        float(jnp.max(jnp.abs(out3 - ref3)))

    print("KERNEL_OK")
</pallas_src>

<mosaic_0001>
module attributes {stable_mosaic.version = 11 : i64} {
  func.func @dnn_kernel(%arg0: i32, %arg1: memref<2x128xf32, #tpu.memory_space<vmem>>, %arg2: memref<128x4xf32, #tpu.memory_space<vmem>>, %arg3: memref<1xf32, #tpu.memory_space<smem>>, %arg4: memref<2x4xf32, #tpu.memory_space<vmem>>) attributes {dimension_semantics = [#tpu.dimension_semantics<parallel>], iteration_bounds = array<i64: 1>, scalar_prefetch = 0 : i64, scratch_operands = 0 : i64, tpu.core_type = #tpu.core_type<tc>, window_params = [{transform_indices = @transform_0, window_bounds = array<i64: 2, 128>}, {pipeline_mode = #tpu.pipeline_mode<synchronous>, transform_indices = @transform_1, window_bounds = array<i64: 128, 4>}, {transform_indices = @transform_2, window_bounds = array<i64: 1>}, {transform_indices = @transform_3, window_bounds = array<i64: 2, 4>}]} {
    %c0 = arith.constant 0 : index
    %c0_0 = arith.constant 0 : index
    %0 = vector.load %arg1[%c0, %c0_0] : memref<2x128xf32, #tpu.memory_space<vmem>>, vector<2x128xf32>
    %c0_1 = arith.constant 0 : index
    %c0_2 = arith.constant 0 : index
    %1 = vector.load %arg2[%c0_1, %c0_2] : memref<128x4xf32, #tpu.memory_space<vmem>>, vector<128x4xf32>
    %cst = arith.constant dense<0.000000e+00> : vector<2x4xf32>
    %2 = tpu.matmul %0, %1, %cst {dimension_numbers = #tpu.dot_dimension_numbers<[1], [0], [0], [1], [0, 0, 1, 1], [], []>} : vector<2x128xf32>, vector<128x4xf32>, vector<2x4xf32> -> vector<2x4xf32>
    %c0_3 = arith.constant 0 : index
    %3 = memref.load %arg3[%c0_3] : memref<1xf32, #tpu.memory_space<smem>>
    %4 = vector.broadcast %3 : f32 to vector<2x4xf32>
    %5 = arith.addf %2, %4 : vector<2x4xf32>
    %cst_4 = arith.constant 0.000000e+00 : f32
    %6 = vector.broadcast %cst_4 : f32 to vector<2x4xf32>
    %7 = arith.subf %6, %5 : vector<2x4xf32>
    %8 = math.exp %7 : vector<2x4xf32>
    %cst_5 = arith.constant 1.000000e+00 : f32
    %9 = vector.broadcast %cst_5 : f32 to vector<2x4xf32>
    %10 = arith.addf %9, %8 : vector<2x4xf32>
    %cst_6 = arith.constant 1.000000e+00 : f32
    %11 = vector.broadcast %cst_6 : f32 to vector<2x4xf32>
    %12 = arith.divf %11, %10 : vector<2x4xf32>
    %c0_7 = arith.constant 0 : index
    %c0_8 = arith.constant 0 : index
    %13 = vector.load %arg4[%c0_7, %c0_8] : memref<2x4xf32, #tpu.memory_space<vmem>>, vector<2x4xf32>
    tpu.vector_store %arg4[%c0_7, %c0_8], %12 {strides = array<i32>} : memref<2x4xf32, #tpu.memory_space<vmem>>, vector<2x4xf32>,
    return
  }
  func.func @transform_0(%arg0: i32) -> (i32, i32) {
    %c0_i32 = arith.constant 0 : i32
    %c0_i32_0 = arith.constant 0 : i32
    return %arg0, %c0_i32 : i32, i32
  }
  func.func @transform_1(%arg0: i32) -> (i32, i32) {
    %c0_i32 = arith.constant 0 : i32
    %c0_i32_0 = arith.constant 0 : i32
    %c0_i32_1 = arith.constant 0 : i32
    return %c0_i32, %c0_i32_0 : i32, i32
  }
  func.func @transform_2(%arg0: i32) -> i32 {
    %c0_i32 = arith.constant 0 : i32
    %c0_i32_0 = arith.constant 0 : i32
    return %c0_i32 : i32
  }
  func.func @transform_3(%arg0: i32) -> (i32, i32) {
    %c0_i32 = arith.constant 0 : i32
    %c0_i32_0 = arith.constant 0 : i32
    return %arg0, %c0_i32 : i32, i32
  }
}

</mosaic_0001>

<llo_original>
// kernel: tpu_custom_call.1
$region0: #{tpu_custom_call.1}
  #allocation0 [shape = 'u32[]', space=smem, size = 0x4, offset = 0x4, fixed_abs, tag = 'smem constant byte address 0x4 - core index']
  #allocation1 [shape = 'u32[72,128]{1,0:T(1,128)}', space=vmem, size = 0x9000, scoped, tag = 'internal scratch']
  #allocation2 [shape = 'f32[1]{0:T(128)S(6)}', space=smem, size = 0x200, scoped, tag = 'scoped memory for tpu_custom_call.1']
  %s0 = inlined_call_operand.vmem [shape: f32[2,128], index: 0, kind: input, shape index: {}]
  %s1 = inlined_call_operand.vmem [shape: f32[128,4], index: 1, kind: input, shape index: {}]
  %s2 = inlined_call_operand.<no memory space> [shape: f32[1], index: 2, kind: input, shape index: {}]
  %s3 = inlined_call_operand.hbm [shape: f32[2,4], index: 3, kind: output, shape index: {}]
  %s4 = sld [smem:[#allocation0]]
  $region22: #{tpu_custom_call.1} parent=0
    _
  %s6 = ssub.s32 1, %s4
  %s7 = scalar_select 0, %s6, %s4
  %8 = sst [smem:[#allocation2]] %s2
  $region1: #{tpu_custom_call.1} parent=0
    #allocation3 [shape = 'u8[1024]{0}', space=vmem, size = 0x400, scoped, tag = 'output window, operand 0, single buffered']
    #allocation4 [shape = 's32[1]{0}', space=sflag, size = 0x4, scoped, tag = 'scoped memory for tpu_custom_call.1']
    %9 = vsyncpa [#allocation4], 0
    // Predicated region
    $region2: #{tpu_custom_call.1} parent=1 // pred_check
      _
    $region3: #{tpu_custom_call.1} parent=1 // pred_check_branch
      %11 = sbr.rel (0) target = $region5
    $region4: #{tpu_custom_call.1} parent=1 // pred_region
      _
    $region5: #{tpu_custom_call.1} parent=1 // pred_fallthru
      _
    // Predicated region
    $region6: #{tpu_custom_call.1} parent=1 // pred_check
      _
    $region7: #{tpu_custom_call.1} parent=1 // pred_check_branch
      %13 = sbr.rel (0) target = $region9
    $region8: #{tpu_custom_call.1} parent=1 // pred_region
      _
    $region9: #{tpu_custom_call.1} parent=1 // pred_fallthru
      _
    // Predicated region
    $region10: #{tpu_custom_call.1} parent=1 // pred_check
      _
    $region11: #{tpu_custom_call.1} parent=1 // pred_check_branch
      %15 = sbr.rel (0) target = $region13
    $region12: #{tpu_custom_call.1} parent=1 // pred_region
      _
    $region13: #{tpu_custom_call.1} parent=1 // pred_fallthru
      _
    %v16 = vld [vmem:[%s0] sm:$0x3]
    %v17 = vld [vmem:[%s1] sm:$0xff]
    %v18 = vld [vmem:[%s1 + $0x8] sm:$0xff]
    %v19 = vld [vmem:[%s1 + $0x10] sm:$0xff]
    %v20 = vld [vmem:[%s1 + $0x18] sm:$0xff]
    %v21 = vld [vmem:[%s1 + $0x20] sm:$0xff]
    %v22 = vld [vmem:[%s1 + $0x28] sm:$0xff]
    %v23 = vld [vmem:[%s1 + $0x30] sm:$0xff]
    %v24 = vld [vmem:[%s1 + $0x38] sm:$0xff]
    %v25 = vld [vmem:[%s1 + $0x40] sm:$0xff]
    %v26 = vld [vmem:[%s1 + $0x48] sm:$0xff]
    %v27 = vld [vmem:[%s1 + $0x50] sm:$0xff]
    %v28 = vld [vmem:[%s1 + $0x58] sm:$0xff]
    %v29 = vld [vmem:[%s1 + $0x60] sm:$0xff]
    %v30 = vld [vmem:[%s1 + $0x68] sm:$0xff]
    %v31 = vld [vmem:[%s1 + $0x70] sm:$0xff]
    %v32 = vld [vmem:[%s1 + $0x78] sm:$0xff]
    %s33 = sld [smem:[#allocation2]]
    %v34 = vstv %s33
    %35 = vmatpush.msra.mxu0 %v32
    %36 = vmatpush.msra.mxu0 %v31
    %37 = vmatpush.msra.mxu0 %v30
    %38 = vmatpush.msra.mxu0 %v29
    %39 = vmatpush.msra.mxu0 %v28
    %40 = vmatpush.msra.mxu0 %v27
    %41 = vmatpush.msra.mxu0 %v26
    %42 = vmatpush.msra.mxu0 %v25
    %43 = vmatpush.msra.mxu0 %v24
    %44 = vmatpush.msra.mxu0 %v23
    %45 = vmatpush.msra.mxu0 %v22
    %46 = vmatpush.msra.mxu0 %v21
    %47 = vmatpush.msra.mxu0 %v20
    %48 = vmatpush.msra.mxu0 %v19
    %49 = vmatpush.msra.mxu0 %v18
    %50 = vmatpush.msra.mxu0 %v17
    %51 = vmatmul.f32.gmra.mxu0 %v16
    %v52 = vpop.f32.mrf.mxu0
    %v53 = vadd.f32 %v34, %v52
    %54 = vdwg.mxu0
    %v55 = vsub.f32 0.0, %v53
    %v56 = vmul.f32 %v55, 1.442695
    %v57 = vpow.pop %v56
    %v58 = vadd.f32 %v57, 1.0
    %v59 = vrcp.pop %v58
    %v60 = vmul.f32 %v58, %v59
    %v61 = vsub.f32 1.0, %v60
    %v62 = vmul.f32 %v59, %v61
    %v63 = vadd.f32 %v59, %v62
    %vm64 = vweird.f32 %v58
    %vm65 = vweird.f32 %v59
    %vm66 = vmor %vm64, %vm65
    %v67 = vsel %vm66, %v59, %v63
    %v68 = vand.u32 2147483647, %v58
    %vm69 = vcmp.eq.f32.partialorder %v68, 8.507059e+37
    %v70 = vand.u32 %v58, 2147483648
    %v71 = vor.u32 1.1754944e-38, %v70
    %v72 = vsel %vm69, %v71, %v67
    %v73 = vmul.f32 1.0, %v72
    %vm74 = vcmask 25600
    %75 = vst.msk [vmem:[#allocation3] sm:$0x3] %vm74, %v73
    // Predicated region
    $region14: #{tpu_custom_call.1} parent=1 // pred_check
      _
    $region15: #{tpu_custom_call.1} parent=1 // pred_check_branch
      %77 = sbr.rel (0) target = $region17
    $region16: #{tpu_custom_call.1} parent=1 // pred_region
      %79 = vsyncadd [#allocation4], 0
      %s81 = sshll.u32 [#allocation3], 4
      %s82 = int_to_ptr.vmem [resolvable:$true] %s81
      %s83 = sshll.u32 %s3, 4
      %s84 = int_to_ptr.hbm [resolvable:$true] %s83
      %86 = dma.vmem_to_hbm [thread:$0]  %s82, 32, %s84, [#allocation4]
    $region17: #{tpu_custom_call.1} parent=1 // pred_fallthru
      _
    // Predicated region
    $region18: #{tpu_custom_call.1} parent=1 // pred_check
      _
    $region19: #{tpu_custom_call.1} parent=1 // pred_check_branch
      %88 = sbr.rel (0) target = $region21
    $region20: #{tpu_custom_call.1} parent=1 // pred_region
      %90 = dma.done [#allocation4], 32
    $region21: #{tpu_custom_call.1} parent=1 // pred_fallthru
      _
    %91 = vsyncpa [#allocation4], 1

</llo_original>
